<compile_context>
chip_gen: v7x
topology: tpu7x:2x2x1
jax: 0.10.0
libtpu: 0.0.40
codegen_flags: <defaults>
</compile_context>

<pallas_src>
import math

import jax
import jax.numpy as jnp
from jax.experimental import pallas as pl
from jax.experimental.pallas import tpu as pltpu


_GELU_C = math.sqrt(2.0 / math.pi)  # Python float -> folds at trace time


def _round_up(a, b):
    return (a + b - 1) // b * b


def _maybe_pad(a, target_shape):
    pads = tuple((0, t - s) for s, t in zip(a.shape, target_shape))
    if all(p == (0, 0) for p in pads):
        return a
    return jnp.pad(a, pads)


def _tpu_vmem_and_cores():
    """Best-effort hardware query: (VMEM bytes per core, TensorCores per chip)."""
    vmem = 64 * 1024 * 1024  # conservative default (v7x per-TC VMEM)
    try:
        vmem = int(pltpu.get_tpu_info().vmem_capacity_bytes)
    except Exception:
        pass
    cores = 1
    try:
        cores = int(getattr(jax.devices()[0], "num_cores", 1)) or 1
    except Exception:
        pass
    # 64 MiB-per-core VMEM implies a v7x-class chip with 2 TensorCores per chip.
    if vmem <= 96 * 1024 * 1024:
        cores = max(cores, 2)
    return vmem, cores


def _tile_bytes(tm, th, E_pad, x_it, w_it, o_it):
    """VMEM footprint of one (tm, th) tile config, incl. double-buffering + temps."""
    b = 2 * tm * E_pad * x_it           # x row tile (double buffered)
    b += 2 * E_pad * th * w_it          # W1 hidden slice
    b += 2 * th * E_pad * w_it          # W2 hidden slice
    b += 2 * 8 * th * 4                 # b1 slice (sublane padded)
    b += 2 * 8 * E_pad * 4              # b2
    b += 2 * tm * E_pad * o_it          # out tile
    b += tm * E_pad * 4                 # f32 accumulator scratch
    b += 2 * tm * th * 4                # f32 h / GELU temporaries
    b += tm * E_pad * 2 + tm * th * 2   # bf16 casts of x and g
    return b


def _pick_tiles(M, emb, hidden, x_it, w_it, o_it, vmem_cap, cores):
    """Pick (tm, th, vmem_budget) per TPU generation."""
    E_pad = _round_up(emb, 128)
    H128 = _round_up(hidden, 128)

    if vmem_cap >= 120 * 2**20:                         # v5e / v6e: 128 MiB VMEM
        budget = 100 * 2**20
    else:                                               # v7x: 64 MiB per TensorCore
        budget = min(max(vmem_cap - 8 * 2**20, 16 * 2**20), 56 * 2**20)

    # Row-tile cap: no bigger than the (padded) problem, and small enough that
    # grid[0] >= #TensorCores so the "parallel" row axis feeds every core.
    tm_cap = _round_up(M, 8)
    if cores > 1 and M > 8:
        tm_cap = min(tm_cap, max(8, _round_up(-(-M // cores), 8)))

    tm_cands = [t for t in (1024, 896, 768, 640, 512, 384, 256, 192, 128, 64, 32, 16, 8)
                if t <= tm_cap] or [8]
    th_cands = [t for t in (1024, 512, 256, 128)
                if t <= H128 and _round_up(hidden, t) == H128] or [128]

    for tm in tm_cands:           # prefer the largest row tile (weight reuse) ...
        for th in th_cands:       # ... then the largest hidden tile (fewer k steps)
            if _tile_bytes(tm, th, E_pad, x_it, w_it, o_it) <= budget:
                return tm, th, budget
    return tm_cands[-1], th_cands[-1], budget


def _ffn_kernel(x_ref, w1_ref, b1_ref, w2_ref, b2_ref, o_ref, acc_ref):
    # x_ref:  (tm, E)     row tile of the input (resident across k)
    # w1_ref: (E, th)     hidden-dim slice of W1
    # b1_ref: (1, th)     matching slice of b1
    # w2_ref: (th, E)     matching slice of W2
    # b2_ref: (1, E)      full b2 (constant block)
    # o_ref:  (tm, E)     output tile (resident across the k axis)
    # acc_ref:(tm, E) f32 accumulator scratch
    k = pl.program_id(1)

    @pl.when(k == 0)
    def _init():
        # Seed the accumulator with b2 -> finalize is just a cast + store.
        acc_ref[...] = jnp.broadcast_to(
            b2_ref[...].astype(jnp.float32), acc_ref.shape)

    # Linear 1 on the MXU with bf16 operands, f32 accumulation.
    xb = x_ref[...].astype(jnp.bfloat16)
    w1b = w1_ref[...].astype(jnp.bfloat16)
    h = jnp.dot(xb, w1b, preferred_element_type=jnp.float32)
    h = h + b1_ref[...].astype(jnp.float32)

    # GELU, tanh approximation (matches the PyTorch GELU module), f32 on VPU/EUP.
    g = 0.5 * h * (1.0 + jnp.tanh(_GELU_C * (h + 0.044715 * (h * h * h))))

    # Linear 2 on the MXU (bf16 operands), accumulate partial products over hidden tiles.
    acc_ref[...] += jnp.dot(g.astype(jnp.bfloat16),
                            w2_ref[...].astype(jnp.bfloat16),
                            preferred_element_type=jnp.float32)

    @pl.when(k == pl.num_programs(1) - 1)
    def _finalize():
        o_ref[...] = acc_ref[...].astype(o_ref.dtype)


def feed_forward(x, w1, b1, w2, b2, *, tm=None, th=None):
    """x: (batch, seq, emb); w1: (emb, 4*emb); b1: (4*emb,); w2: (4*emb, emb); b2: (emb,).

    Returns same shape/dtype as x.  tm / th = optional row / hidden tile overrides;
    by default they are chosen per TPU generation from the VMEM budget.
    """
    batch, seq, emb = x.shape
    hidden = w1.shape[1]
    assert w1.shape == (emb, hidden) and w2.shape == (hidden, emb)
    assert b1.shape == (hidden,) and b2.shape == (emb,)

    M = batch * seq
    E_pad = _round_up(emb, 128)

    x_it = x.dtype.itemsize
    w_it = w1.dtype.itemsize
    vmem_cap, cores = _tpu_vmem_and_cores()
    tm_auto, th_auto, budget = _pick_tiles(M, emb, hidden, x_it, w_it, x_it,
                                           vmem_cap, cores)
    tm_eff = tm_auto if tm is None else min(tm, _round_up(M, 8))
    th_eff = th_auto if th is None else min(th, _round_up(hidden, 128))
    assert tm_eff % 8 == 0 and th_eff % 128 == 0

    H_pad = _round_up(hidden, th_eff)
    M_pad = _round_up(M, tm_eff)

    # Padding is skipped entirely when shapes are already aligned (the common case).
    x2d = _maybe_pad(x.reshape(M, emb), (M_pad, E_pad))
    w1p = _maybe_pad(w1, (E_pad, H_pad))
    b1p = _maybe_pad(b1.reshape(1, hidden), (1, H_pad))
    w2p = _maybe_pad(w2, (H_pad, E_pad))
    b2p = _maybe_pad(b2.reshape(1, emb), (1, E_pad))

    grid = (M_pad // tm_eff, H_pad // th_eff)

    # VMEM limit from the real footprint (already includes double-buffering + temps).
    need = _tile_bytes(tm_eff, th_eff, E_pad, x_it, w_it, x_it)
    vmem_limit = int(min(budget, max(32 * 2**20, int(need * 1.25))))

    n_row_tiles = grid[0]
    cost = pl.CostEstimate(
        flops=4 * M_pad * E_pad * H_pad,               # two matmuls, 2*M*E*H each
        transcendentals=M_pad * H_pad,                 # tanh
        bytes_accessed=(x2d.size * x_it
                        + n_row_tiles * (w1p.size + w2p.size) * w_it
                        + b1p.size * b1p.dtype.itemsize
                        + b2p.size * b2p.dtype.itemsize
                        + M_pad * E_pad * x_it),
    )

    out2d = pl.pallas_call(
        _ffn_kernel,
        out_shape=jax.ShapeDtypeStruct((M_pad, E_pad), x.dtype),
        grid_spec=pltpu.PrefetchScalarGridSpec(
            num_scalar_prefetch=0,
            grid=grid,
            in_specs=[
                pl.BlockSpec((tm_eff, E_pad), lambda i, k: (i, 0)),   # x row tile
                pl.BlockSpec((E_pad, th_eff), lambda i, k: (0, k)),   # W1 hidden slice
                pl.BlockSpec((1, th_eff), lambda i, k: (0, k)),       # b1 slice
                pl.BlockSpec((th_eff, E_pad), lambda i, k: (k, 0)),   # W2 hidden slice
                pl.BlockSpec((1, E_pad), lambda i, k: (0, 0)),        # b2 (constant)
            ],
            out_specs=pl.BlockSpec((tm_eff, E_pad), lambda i, k: (i, 0)),
            scratch_shapes=[pltpu.VMEM((tm_eff, E_pad), jnp.float32)],
        ),
        compiler_params=pltpu.CompilerParams(
            dimension_semantics=("parallel", "arbitrary"),
            vmem_limit_bytes=vmem_limit,
        ),
        cost_estimate=cost,
    )(x2d, w1p, b1p, w2p, b2p)

    if M_pad != M or E_pad != emb:
        out2d = out2d[:M, :emb]
    return out2d.reshape(batch, seq, emb)


def _reference(x, w1, b1, w2, b2):
    # Same math as the kernel: bf16 MXU operands, f32 accumulation, tanh GELU, f32 bias.
    xb, w1b, w2b = (a.astype(jnp.bfloat16) for a in (x, w1, w2))
    h = jnp.dot(xb, w1b, preferred_element_type=jnp.float32) + b1
    g = 0.5 * h * (1.0 + jnp.tanh(_GELU_C * (h + 0.044715 * h ** 3)))
    return jnp.dot(g.astype(jnp.bfloat16), w2b, preferred_element_type=jnp.float32) + b2


if __name__ == "__main__":
    # Small, deterministic problem; emb chosen lane-dense (multiple of 128).
    batch, seq, emb = 2, 8, 128
    hidden = 4 * emb

    key = jax.random.PRNGKey(0)
    kx, kw1, kb1, kw2, kb2 = jax.random.split(key, 5)

    x = jax.random.normal(kx, (batch, seq, emb), dtype=jnp.float32)
    # Params as in nn.Linear(emb, 4*emb) / nn.Linear(4*emb, emb), stored transposed
    # so the kernel computes x @ W + b.
    w1 = jax.random.normal(kw1, (emb, hidden), dtype=jnp.float32) * (1.0 / math.sqrt(emb))
    b1 = jax.random.normal(kb1, (hidden,), dtype=jnp.float32) * 0.01
    w2 = jax.random.normal(kw2, (hidden, emb), dtype=jnp.float32) * (1.0 / math.sqrt(hidden))
    b2 = jax.random.normal(kb2, (emb,), dtype=jnp.float32) * 0.01

    out = feed_forward(x, w1, b1, w2, b2)
    out = jax.block_until_ready(out)

    ref = _reference(x, w1, b1, w2, b2)
    assert out.shape == (batch, seq, emb)
    assert out.dtype == x.dtype
    # bf16 MXU operands -> compare against a bf16-operand reference with a relaxed tol.
    assert jnp.allclose(out, ref, atol=1e-2, rtol=1e-2), "mismatch vs reference"

    print("KERNEL_OK")
</pallas_src>

<mosaic_0001>
module attributes {stable_mosaic.version = 11 : i64} {
  func.func @_ffn_kernel(%arg0: i32, %arg1: i32, %arg2: memref<8x128xf32, #tpu.memory_space<vmem>>, %arg3: memref<128x512xf32, #tpu.memory_space<vmem>>, %arg4: memref<1x512xf32, #tpu.memory_space<vmem>>, %arg5: memref<512x128xf32, #tpu.memory_space<vmem>>, %arg6: memref<1x128xf32, #tpu.memory_space<vmem>>, %arg7: memref<8x128xf32, #tpu.memory_space<vmem>>, %arg8: memref<8x128xf32, #tpu.memory_space<vmem>>) attributes {dimension_semantics = [#tpu.dimension_semantics<parallel>, #tpu.dimension_semantics<arbitrary>], iteration_bounds = array<i64: 2, 1>, scalar_prefetch = 0 : i64, scratch_operands = 1 : i64, tpu.core_type = #tpu.core_type<tc>, window_params = [{transform_indices = @transform_0, window_bounds = array<i64: 8, 128>}, {transform_indices = @transform_1, window_bounds = array<i64: 128, 512>}, {transform_indices = @transform_2, window_bounds = array<i64: 1, 512>}, {transform_indices = @transform_3, window_bounds = array<i64: 512, 128>}, {pipeline_mode = #tpu.pipeline_mode<synchronous>, transform_indices = @transform_4, window_bounds = array<i64: 1, 128>}, {transform_indices = @transform_5, window_bounds = array<i64: 8, 128>}]} {
    %c0_i32 = arith.constant 0 : i32
    %0 = arith.cmpi eq, %arg1, %c0_i32 : i32
    %1 = arith.extui %0 : i1 to i32
    %c0_i32_0 = arith.constant 0 : i32
    %2 = arith.cmpi ne, %1, %c0_i32_0 : i32
    scf.if %2 {
      %c0_19 = arith.constant 0 : index
      %c0_20 = arith.constant 0 : index
      %34 = vector.load %arg6[%c0_19, %c0_20] : memref<1x128xf32, #tpu.memory_space<vmem>>, vector<1x128xf32>
      %35 = vector.shape_cast %34 : vector<1x128xf32> to vector<1x128xf32>
      %36 = vector.broadcast %35 : vector<1x128xf32> to vector<8x128xf32>
      %c0_21 = arith.constant 0 : index
      %c0_22 = arith.constant 0 : index
      %37 = vector.load %arg8[%c0_21, %c0_22] : memref<8x128xf32, #tpu.memory_space<vmem>>, vector<8x128xf32>
      tpu.vector_store %arg8[%c0_21, %c0_22], %36 {strides = array<i32>} : memref<8x128xf32, #tpu.memory_space<vmem>>, vector<8x128xf32>,
    } else {
    }
    %c0 = arith.constant 0 : index
    %c0_1 = arith.constant 0 : index
    %3 = vector.load %arg2[%c0, %c0_1] : memref<8x128xf32, #tpu.memory_space<vmem>>, vector<8x128xf32>
    %4 = arith.truncf %3 : vector<8x128xf32> to vector<8x128xbf16>
    %c0_2 = arith.constant 0 : index
    %c0_3 = arith.constant 0 : index
    %5 = vector.load %arg3[%c0_2, %c0_3] : memref<128x512xf32, #tpu.memory_space<vmem>>, vector<128x512xf32>
    %6 = arith.truncf %5 : vector<128x512xf32> to vector<128x512xbf16>
    %cst = arith.constant dense<0.000000e+00> : vector<8x512xf32>
    %7 = tpu.matmul %4, %6, %cst {dimension_numbers = #tpu.dot_dimension_numbers<[1], [0], [0], [1], [0, 0, 1, 1], [], []>} : vector<8x128xbf16>, vector<128x512xbf16>, vector<8x512xf32> -> vector<8x512xf32>
    %c0_4 = arith.constant 0 : index
    %c0_5 = arith.constant 0 : index
    %8 = vector.load %arg4[%c0_4, %c0_5] : memref<1x512xf32, #tpu.memory_space<vmem>>, vector<1x512xf32>
    %9 = vector.broadcast %8 : vector<1x512xf32> to vector<8x512xf32>
    %10 = arith.addf %7, %9 : vector<8x512xf32>
    %cst_6 = arith.constant 5.000000e-01 : f32
    %11 = vector.broadcast %cst_6 : f32 to vector<8x512xf32>
    %12 = arith.mulf %11, %10 : vector<8x512xf32>
    %13 = arith.mulf %10, %10 : vector<8x512xf32>
    %14 = arith.mulf %13, %10 : vector<8x512xf32>
    %cst_7 = arith.constant 4.471500e-02 : f32
    %15 = vector.broadcast %cst_7 : f32 to vector<8x512xf32>
    %16 = arith.mulf %15, %14 : vector<8x512xf32>
    %17 = arith.addf %10, %16 : vector<8x512xf32>
    %cst_8 = arith.constant 0.797884583 : f32
    %18 = vector.broadcast %cst_8 : f32 to vector<8x512xf32>
    %19 = arith.mulf %18, %17 : vector<8x512xf32>
    %20 = math.tanh %19 : vector<8x512xf32>
    %cst_9 = arith.constant 1.000000e+00 : f32
    %21 = vector.broadcast %cst_9 : f32 to vector<8x512xf32>
    %22 = arith.addf %21, %20 : vector<8x512xf32>
    %23 = arith.mulf %12, %22 : vector<8x512xf32>
    %c0_10 = arith.constant 0 : index
    %c0_11 = arith.constant 0 : index
    %24 = vector.load %arg8[%c0_10, %c0_11] : memref<8x128xf32, #tpu.memory_space<vmem>>, vector<8x128xf32>
    %25 = arith.truncf %23 : vector<8x512xf32> to vector<8x512xbf16>
    %c0_12 = arith.constant 0 : index
    %c0_13 = arith.constant 0 : index
    %26 = vector.load %arg5[%c0_12, %c0_13] : memref<512x128xf32, #tpu.memory_space<vmem>>, vector<512x128xf32>
    %27 = arith.truncf %26 : vector<512x128xf32> to vector<512x128xbf16>
    %cst_14 = arith.constant dense<0.000000e+00> : vector<8x128xf32>
    %28 = tpu.matmul %25, %27, %cst_14 {dimension_numbers = #tpu.dot_dimension_numbers<[1], [0], [0], [1], [0, 0, 1, 1], [], []>} : vector<8x512xbf16>, vector<512x128xbf16>, vector<8x128xf32> -> vector<8x128xf32>
    %29 = arith.addf %24, %28 : vector<8x128xf32>
    %c0_15 = arith.constant 0 : index
    %c0_16 = arith.constant 0 : index
    %30 = vector.load %arg8[%c0_15, %c0_16] : memref<8x128xf32, #tpu.memory_space<vmem>>, vector<8x128xf32>
    tpu.vector_store %arg8[%c0_15, %c0_16], %29 {strides = array<i32>} : memref<8x128xf32, #tpu.memory_space<vmem>>, vector<8x128xf32>,
    %c0_i32_17 = arith.constant 0 : i32
    %31 = arith.cmpi eq, %arg1, %c0_i32_17 : i32
    %32 = arith.extui %31 : i1 to i32
    %c0_i32_18 = arith.constant 0 : i32
    %33 = arith.cmpi ne, %32, %c0_i32_18 : i32
    scf.if %33 {
      %c0_19 = arith.constant 0 : index
      %c0_20 = arith.constant 0 : index
      %34 = vector.load %arg8[%c0_19, %c0_20] : memref<8x128xf32, #tpu.memory_space<vmem>>, vector<8x128xf32>
      %c0_21 = arith.constant 0 : index
      %c0_22 = arith.constant 0 : index
      %35 = vector.load %arg7[%c0_21, %c0_22] : memref<8x128xf32, #tpu.memory_space<vmem>>, vector<8x128xf32>
      tpu.vector_store %arg7[%c0_21, %c0_22], %34 {strides = array<i32>} : memref<8x128xf32, #tpu.memory_space<vmem>>, vector<8x128xf32>,
    } else {
    }
    return
  }
  func.func @transform_0(%arg0: i32, %arg1: i32) -> (i32, i32) {
    %c0_i32 = arith.constant 0 : i32
    %c0_i32_0 = arith.constant 0 : i32
    return %arg0, %c0_i32 : i32, i32
  }
  func.func @transform_1(%arg0: i32, %arg1: i32) -> (i32, i32) {
    %c0_i32 = arith.constant 0 : i32
    %c0_i32_0 = arith.constant 0 : i32
    return %c0_i32, %arg1 : i32, i32
  }
  func.func @transform_2(%arg0: i32, %arg1: i32) -> (i32, i32) {
    %c0_i32 = arith.constant 0 : i32
    %c0_i32_0 = arith.constant 0 : i32
    return %c0_i32, %arg1 : i32, i32
  }
  func.func @transform_3(%arg0: i32, %arg1: i32) -> (i32, i32) {
    %c0_i32 = arith.constant 0 : i32
    %c0_i32_0 = arith.constant 0 : i32
    return %arg1, %c0_i32 : i32, i32
  }
  func.func @transform_4(%arg0: i32, %arg1: i32) -> (i32, i32) {
    %c0_i32 = arith.constant 0 : i32
    %c0_i32_0 = arith.constant 0 : i32
    %c0_i32_1 = arith.constant 0 : i32
    return %c0_i32, %c0_i32_0 : i32, i32
  }
  func.func @transform_5(%arg0: i32, %arg1: i32) -> (i32, i32) {
    %c0_i32 = arith.constant 0 : i32
    %c0_i32_0 = arith.constant 0 : i32
    return %arg0, %c0_i32 : i32, i32
  }
}

</mosaic_0001>

<llo_original>
// kernel: tpu_custom_call.1
$region0: #{tpu_custom_call.1}
  #allocation0 [shape = 'u32[]', space=smem, size = 0x4, offset = 0x4, fixed_abs, tag = 'smem constant byte address 0x4 - core index']
  #allocation1 [shape = 'u32[144,128]{1,0:T(1,128)}', space=vmem, size = 0x12000, scoped, tag = 'internal scratch']
  #allocation2 [shape = 'f32[8,128]{1,0:T(8,128)}', space=vmem, size = 0x1000, scoped, tag = 'scratch operand']
  %s0 = inlined_call_operand.hbm [shape: f32[16,128], index: 0, kind: input, shape index: {}]
  %s1 = inlined_call_operand.hbm [shape: f32[128,512], index: 1, kind: input, shape index: {}]
  %s2 = inlined_call_operand.vmem [shape: f32[1,512], index: 2, kind: input, shape index: {}]
  %s3 = inlined_call_operand.hbm [shape: f32[512,128], index: 3, kind: input, shape index: {}]
  %s4 = inlined_call_operand.vmem [shape: f32[1,128], index: 4, kind: input, shape index: {}]
  %s5 = inlined_call_operand.hbm [shape: f32[16,128], index: 5, kind: output, shape index: {}]
  %s6 = sld [smem:[#allocation0]]
  $region73: #{tpu_custom_call.1} parent=0
    _
  %s8 = ssub.s32 1, %s6
  %s9 = scalar_select 0, %s8, %s6
  $region1: #{tpu_custom_call.1} parent=0
    #allocation3 [shape = 'u8[8192]{0}', space=vmem, size = 0x2000, scoped, tag = 'input window, operand 0']
    #allocation4 [shape = 's32[2]{0}', space=sflag, size = 0x8, scoped, tag = 'scoped memory for tpu_custom_call.1']
    #allocation5 [shape = 's32[2]{0}', space=sflag, size = 0x8, scoped, tag = 'scoped memory for tpu_custom_call.1']
    #allocation6 [shape = 'u8[262144]{0}', space=vmem, size = 0x40000, scoped, tag = 'input window, operand 1, single buffered']
    #allocation7 [shape = 's32[1]{0}', space=sflag, size = 0x4, scoped, tag = 'scoped memory for tpu_custom_call.1']
    #allocation8 [shape = 'u8[262144]{0}', space=vmem, size = 0x40000, scoped, tag = 'input window, operand 3, single buffered']
    #allocation9 [shape = 'u8[8192]{0}', space=vmem, size = 0x2000, scoped, tag = 'output window, operand 0']
    %10 = vsyncpa [#allocation4], 0
    %s11 = scalar_lea.sflag [#allocation4], 1
    %12 = vsyncpa %s11, 0
    %13 = vsyncpa [#allocation7], 0
    %14 = vsyncpa [#allocation5], 0
    %s15 = scalar_lea.sflag [#allocation5], 1
    %16 = vsyncpa %s15, 0
    loop: start=0, step=1, limit=4
    $region2: #{tpu_custom_call.1} parent=1 // loop_pre_header
      _
    $region3: #{tpu_custom_call.1} parent=1 // loop_header
      %s18 = sphi 0, %s22
      %p19 = scmp.ge.s32.totalorder %s18, 4
      %s25 = sphi 0, %s37
      %s26 = sphi 0, %s33
      %s27 = sphi 0, %s25
      %s28 = sphi 0, %s26
      %s29 = sphi 0, %s27
      %s30 = sphi 0, %s28
      %s40 = sphi 0, %s42
      %s43 = sphi 0, %s40
      %s44 = sphi 0, %s43
      %s60 = sphi 0, %s44
      %s66 = sphi 0, %s68
      %s69 = sphi 0, %s66
      %s70 = sphi 0, %s69
      %s86 = sphi 0, %s70
      %s92 = sphi 0, %s94
      %s95 = sphi 0, %s92
      %s96 = sphi 0, %s95
      %s112 = sphi 0, %s96
      %s118 = sphi 0, %s120
      %s121 = sphi 0, %s118
      %s122 = sphi 0, %s121
      %s138 = sphi 0, %s122
      %s142 = sphi 0, %s142
      %s144 = sphi 0, %s142
      %s145 = sphi 0, %s144
      %s159 = sphi 0, %s145
      %s165 = sphi 0, %s167
      %s168 = sphi 0, %s165
      %s169 = sphi 0, %s168
      %s185 = sphi 0, %s169
    $region4: #{tpu_custom_call.1} parent=1 // loop_header_branch
      %21 = sbr.rel (%p19) target = $region8
    $region5: #{tpu_custom_call.1} parent=1 // loop_body
      %s23 = ssub.s32 %s18, 1
      %s24 = ssub.s32 %s18, 2
      %s31 = sadd.s32 1, %s26
      %p32 = scmp.ge.s32.totalorder %s31, 1
      %s33 = scalar_select %p32, 0, %s31
      %s34 = sadd.s32 1, %s25
      %s35 = scalar_select %p32, %s34, %s25
      %p36 = scmp.ge.s32.totalorder %s35, 2
      %s37 = scalar_select %p36, 0, %s35
      %s38 = ssub.s32 %s25, %s37
      %p39 = scmp.eq.s32.totalorder %s38, 0
      %s41 = sadd.s32 %s40, 1
      %s42 = scalar_select %p39, %s40, %s41
      %p45 = pneg %p39
      %p46 = scmp.eq.s32.totalorder %s18, 1
      %p47 = por %p45, %p46
      %p48 = scmp.ne.s32.totalorder %s40, %s43
      %p49 = scmp.eq.s32.totalorder %s18, 0
      %p50 = por %p48, %p49
      %p51 = scmp.ne.s32.totalorder %s40, %s43
      %p52 = scmp.eq.s32.totalorder %s23, 1
      %p53 = por %p51, %p52
      %p54 = scmp.ne.s32.totalorder %s43, %s44
      %p55 = scmp.eq.s32.totalorder %s23, 0
      %p56 = por %p54, %p55
      %p57 = scmp.ne.s32.totalorder %s43, %s44
      %p58 = scmp.eq.s32.totalorder %s24, 1
      %p59 = por %p57, %p58
      %p61 = scmp.ne.s32.totalorder %s44, %s60
      %p62 = scmp.eq.s32.totalorder %s24, 0
      %p63 = por %p61, %p62
      %s64 = ssub.s32 %s26, %s33
      %p65 = scmp.eq.s32.totalorder %s64, 0
      %s67 = sadd.s32 %s66, 1
      %s68 = scalar_select %p65, %s66, %s67
      %p71 = pneg %p65
      %p72 = scmp.eq.s32.totalorder %s18, 1
      %p73 = por %p71, %p72
      %p74 = scmp.ne.s32.totalorder %s66, %s69
      %p75 = scmp.eq.s32.totalorder %s18, 0
      %p76 = por %p74, %p75
      %p77 = scmp.ne.s32.totalorder %s66, %s69
      %p78 = scmp.eq.s32.totalorder %s23, 1
      %p79 = por %p77, %p78
      %p80 = scmp.ne.s32.totalorder %s69, %s70
      %p81 = scmp.eq.s32.totalorder %s23, 0
      %p82 = por %p80, %p81
      %p83 = scmp.ne.s32.totalorder %s69, %s70
      %p84 = scmp.eq.s32.totalorder %s24, 1
      %p85 = por %p83, %p84
      %p87 = scmp.ne.s32.totalorder %s70, %s86
      %p88 = scmp.eq.s32.totalorder %s24, 0
      %p89 = por %p87, %p88
      %s90 = ssub.s32 %s26, %s33
      %p91 = scmp.eq.s32.totalorder %s90, 0
      %s93 = sadd.s32 %s92, 1
      %s94 = scalar_select %p91, %s92, %s93
      %p97 = pneg %p91
      %p98 = scmp.eq.s32.totalorder %s18, 1
      %p99 = por %p97, %p98
      %p100 = scmp.ne.s32.totalorder %s92, %s95
      %p101 = scmp.eq.s32.totalorder %s18, 0
      %p102 = por %p100, %p101
      %p103 = scmp.ne.s32.totalorder %s92, %s95
      %p104 = scmp.eq.s32.totalorder %s23, 1
      %p105 = por %p103, %p104
      %p106 = scmp.ne.s32.totalorder %s95, %s96
      %p107 = scmp.eq.s32.totalorder %s23, 0
      %p108 = por %p106, %p107
      %p109 = scmp.ne.s32.totalorder %s95, %s96
      %p110 = scmp.eq.s32.totalorder %s24, 1
      %p111 = por %p109, %p110
      %p113 = scmp.ne.s32.totalorder %s96, %s112
      %p114 = scmp.eq.s32.totalorder %s24, 0
      %p115 = por %p113, %p114
      %s116 = ssub.s32 %s26, %s33
      %p117 = scmp.eq.s32.totalorder %s116, 0
      %s119 = sadd.s32 %s118, 1
      %s120 = scalar_select %p117, %s118, %s119
      %p123 = pneg %p117
      %p124 = scmp.eq.s32.totalorder %s18, 1
      %p125 = por %p123, %p124
      %p126 = scmp.ne.s32.totalorder %s118, %s121
      %p127 = scmp.eq.s32.totalorder %s18, 0
      %p128 = por %p126, %p127
      %p129 = scmp.ne.s32.totalorder %s118, %s121
      %p130 = scmp.eq.s32.totalorder %s23, 1
      %p131 = por %p129, %p130
      %p132 = scmp.ne.s32.totalorder %s121, %s122
      %p133 = scmp.eq.s32.totalorder %s23, 0
      %p134 = por %p132, %p133
      %p135 = scmp.ne.s32.totalorder %s121, %s122
      %p136 = scmp.eq.s32.totalorder %s24, 1
      %p137 = por %p135, %p136
      %p139 = scmp.ne.s32.totalorder %s122, %s138
      %p140 = scmp.eq.s32.totalorder %s24, 0
      %p141 = por %p139, %p140
      %s143 = sadd.s32 %s142, 1
      %p146 = scmp.eq.s32.totalorder %s18, 1
      %p147 = scmp.ne.s32.totalorder %s142, %s144
      %p148 = scmp.eq.s32.totalorder %s18, 0
      %p149 = por %p147, %p148
      %p150 = scmp.ne.s32.totalorder %s142, %s144
      %p151 = scmp.eq.s32.totalorder %s23, 1
      %p152 = por %p150, %p151
      %p153 = scmp.ne.s32.totalorder %s144, %s145
      %p154 = scmp.eq.s32.totalorder %s23, 0
      %p155 = por %p153, %p154
      %p156 = scmp.ne.s32.totalorder %s144, %s145
      %p157 = scmp.eq.s32.totalorder %s24, 1
      %p158 = por %p156, %p157
      %p160 = scmp.ne.s32.totalorder %s145, %s159
      %p161 = scmp.eq.s32.totalorder %s24, 0
      %p162 = por %p160, %p161
      %s163 = ssub.s32 %s25, %s37
      %p164 = scmp.eq.s32.totalorder %s163, 0
      %s166 = sadd.s32 %s165, 1
      %s167 = scalar_select %p164, %s165, %s166
      %p170 = pneg %p164
      %p171 = scmp.eq.s32.totalorder %s18, 1
      %p172 = por %p170, %p171
      %p173 = scmp.ne.s32.totalorder %s165, %s168
      %p174 = scmp.eq.s32.totalorder %s18, 0
      %p175 = por %p173, %p174
      %p176 = scmp.ne.s32.totalorder %s165, %s168
      %p177 = scmp.eq.s32.totalorder %s23, 1
      %p178 = por %p176, %p177
      %p179 = scmp.ne.s32.totalorder %s168, %s169
      %p180 = scmp.eq.s32.totalorder %s23, 0
      %p181 = por %p179, %p180
      %p182 = scmp.ne.s32.totalorder %s168, %s169
      %p183 = scmp.eq.s32.totalorder %s24, 1
      %p184 = por %p182, %p183
      %p186 = scmp.ne.s32.totalorder %s169, %s185
      %p187 = scmp.eq.s32.totalorder %s24, 0
      %p188 = por %p186, %p187
      %p189 = scmp.le.s32.totalorder 1, %s18
      %p190 = scmp.lt.s32.totalorder %s18, 3
      %p191 = pnand %p189, %p190
      %p192 = pneg %p191
      // Predicated region
      $region9: #{tpu_custom_call.1} parent=5 // pred_check
        _
      $region10: #{tpu_custom_call.1} parent=5 // pred_check_branch
        %194 = sbr.rel (%p191) target = $region12
      $region11: #{tpu_custom_call.1} parent=5 // pred_region
        %s195 = ssub.s32 %s18, 1
        // Predicated region
        $region13: #{tpu_custom_call.1} parent=11 // pred_check
          %p196 = pneg %p82
        $region14: #{tpu_custom_call.1} parent=11 // pred_check_branch
          %198 = sbr.rel (%p196) target = $region16
        $region15: #{tpu_custom_call.1} parent=11 // pred_region
          %s199 = smul.u32 4, %s28
          %s201 = ssub.s32 8192, 8192
          %202 = vsyncadd [#allocation7], %s201
          %s203 = smul.addr %s199, 128
          %s204 = scalar_lea.hbm %s1, %s203
          %s205 = sshll.u32 [#allocation6], 4
          %s206 = int_to_ptr.vmem [resolvable:$true] %s205
          %211 = dma.hbm_to_vmem [thread:$0]  %s204, 8192, %s206, [#allocation7], 512, 512, 32
        $region16: #{tpu_custom_call.1} parent=11 // pred_fallthru
          _
        // Predicated region
        $region17: #{tpu_custom_call.1} parent=11 // pred_check
          %p212 = pneg %p108
        $region18: #{tpu_custom_call.1} parent=11 // pred_check_branch
          %214 = sbr.rel (%p212) target = $region20
        $region19: #{tpu_custom_call.1} parent=11 // pred_region
          %s215 = smul.u32 4, %s28
          %p216 = scmp.lt.s32.totalorder %s215, 3
          %s217 = scalar_select %p216, %s215, 3
          %s218 = scalar_lea.vmem %s2, %s217
          %s219 = smul.u32 4, %s28
        $region20: #{tpu_custom_call.1} parent=11 // pred_fallthru
          _
        // Predicated region
        $region21: #{tpu_custom_call.1} parent=11 // pred_check
          %p220 = pneg %p134
        $region22: #{tpu_custom_call.1} parent=11 // pred_check_branch
          %222 = sbr.rel (%p220) target = $region24
        $region23: #{tpu_custom_call.1} parent=11 // pred_region
          %s223 = smul.u32 64, %s28
          %s225 = ssub.s32 8192, 8192
          %226 = vsyncadd [#allocation7], %s225
          %s227 = smul.addr %s223, 128
          %s228 = scalar_lea.hbm %s3, %s227
          %s229 = sshll.u32 [#allocation8], 4
          %s230 = int_to_ptr.vmem [resolvable:$true] %s229
          %235 = dma.hbm_to_vmem [thread:$0]  %s228, 8192, %s230, [#allocation7], 128, 128, 8
        $region24: #{tpu_custom_call.1} parent=11 // pred_fallthru
          _
        // Predicated region
        $region25: #{tpu_custom_call.1} parent=11 // pred_check
          %p236 = pneg %p155
        $region26: #{tpu_custom_call.1} parent=11 // pred_check_branch
          %238 = sbr.rel (%p236) target = $region28
        $region27: #{tpu_custom_call.1} parent=11 // pred_region
          _
        $region28: #{tpu_custom_call.1} parent=11 // pred_fallthru
          _
      $region12: #{tpu_custom_call.1} parent=5 // pred_fallthru
        _
      %p239 = scmp.lt.s32.totalorder %s18, 2
      // Predicated region
      $region29: #{tpu_custom_call.1} parent=5 // pred_check
        %p240 = pneg %p239
      $region30: #{tpu_custom_call.1} parent=5 // pred_check_branch
        %242 = sbr.rel (%p240) target = $region32
      $region31: #{tpu_custom_call.1} parent=5 // pred_region
        // Predicated region
        $region33: #{tpu_custom_call.1} parent=31 // pred_check
          %p243 = pneg %p50
        $region34: #{tpu_custom_call.1} parent=31 // pred_check_branch
          %245 = sbr.rel (%p243) target = $region36
        $region35: #{tpu_custom_call.1} parent=31 // pred_region
          %s246 = sand.u32 %s40, 1
          %s247 = scalar_lea.sflag [#allocation4], %s246
          %s248 = sand.u32 %s40, 1
          %s249 = smul.addr %s248, 8
          %s250 = scalar_lea.vmem [#allocation3], %s249
          %s252 = ssub.s32 128, 128
          %253 = vsyncadd %s247, %s252
          %s254 = smul.addr %s25, 128
          %s255 = scalar_lea.hbm %s0, %s254
          %s257 = sshll.u32 %s250, 4
          %s258 = int_to_ptr.vmem [resolvable:$true] %s257
          %260 = dma.hbm_to_vmem [thread:$0]  %s255, 128, %s258, %s247
        $region36: #{tpu_custom_call.1} parent=31 // pred_fallthru
          _
      $region32: #{tpu_custom_call.1} parent=5 // pred_fallthru
        _
      %p261 = scmp.le.s32.totalorder 1, %s18
      %p262 = scmp.lt.s32.totalorder %s18, 3
      %p263 = pnand %p261, %p262
      %p264 = pneg %p263
      // Predicated region
      $region37: #{tpu_custom_call.1} parent=5 // pred_check
        _
      $region38: #{tpu_custom_call.1} parent=5 // pred_check_branch
        %266 = sbr.rel (%p263) target = $region40
      $region39: #{tpu_custom_call.1} parent=5 // pred_region
        %s267 = ssub.s32 %s18, 1
        %s268 = sand.u32 %s43, 1
        %s269 = scalar_lea.sflag [#allocation4], %s268
        %s270 = sand.u32 %s43, 1
        %s271 = smul.addr %s270, 8
        %s272 = scalar_lea.vmem [#allocation3], %s271
        // Predicated region
        $region41: #{tpu_custom_call.1} parent=39 // pred_check
          %p273 = pneg %p56
        $region42: #{tpu_custom_call.1} parent=39 // pred_check_branch
          %275 = sbr.rel (%p273) target = $region44
        $region43: #{tpu_custom_call.1} parent=39 // pred_region
          %276 = dma.done %s269, 128
        $region44: #{tpu_custom_call.1} parent=39 // pred_fallthru
          _
        // Predicated region
        $region45: #{tpu_custom_call.1} parent=39 // pred_check
          %p277 = pneg %p82
        $region46: #{tpu_custom_call.1} parent=39 // pred_check_branch
          %279 = sbr.rel (%p277) target = $region48
        $region47: #{tpu_custom_call.1} parent=39 // pred_region
          %280 = dma.done [#allocation7], 8192
        $region48: #{tpu_custom_call.1} parent=39 // pred_fallthru
          _
        // Predicated region
        $region49: #{tpu_custom_call.1} parent=39 // pred_check
          %p281 = pneg %p134
        $region50: #{tpu_custom_call.1} parent=39 // pred_check_branch
          %283 = sbr.rel (%p281) target = $region52
        $region51: #{tpu_custom_call.1} parent=39 // pred_region
          %284 = dma.done [#allocation7], 8192
        $region52: #{tpu_custom_call.1} parent=39 // pred_fallthru
          _
        %s285 = sand.u32 %s43, 1
        %s286 = scalar_lea.sflag [#allocation4], %s285
        %s287 = sand.u32 %s43, 1
        %s288 = smul.addr %s287, 8
        %s289 = scalar_lea.vmem [#allocation3], %s288
        %p290 = pneg %p56
        %p291 = pneg %p53
        %p292 = pneg %p82
        %p293 = pneg %p79
        %s294 = smul.u32 4, %s28
        %p295 = scmp.lt.s32.totalorder %s294, 3
        %s296 = scalar_select %p295, %s294, 3
        %s297 = scalar_lea.vmem %s2, %s296
        %p298 = pneg %p108
        %p299 = pneg %p105
        %p300 = pneg %p134
        %p301 = pneg %p131
        %p302 = pneg %p155
        %p303 = pneg %p152
        %p304 = pneg %p181
        %p305 = pneg %p178
        %s306 = sand.u32 %s168, 1
        %s307 = scalar_lea.sflag [#allocation5], %s306
        %s308 = sand.u32 %s168, 1
        %s309 = smul.addr %s308, 8
        %s310 = scalar_lea.vmem [#allocation9], %s309
        %s311 = smul.u32 4, %s28
        %s312 = smul.u32 4, %s28
        %p313 = scmp.lt.s32.totalorder %s312, 3
        %s314 = scalar_select %p313, %s312, 3
        %s315 = scalar_lea.vmem %s2, %s314
        %s316 = smul.u32 4, %s28
        %s317 = smul.u32 64, %s28
        %p319 = scmp.eq.s32.totalorder %s28, 0
        // Predicated region
        $region53: #{tpu_custom_call.1} parent=39 // pred_check
          %p320 = pneg %p319
        $region54: #{tpu_custom_call.1} parent=39 // pred_check_branch
          %322 = sbr.rel (%p320) target = $region56
        $region55: #{tpu_custom_call.1} parent=39 // pred_region
          %v323 = vld [vmem:[%s4] sm:$0x1]
          %v325 = vlaneseq
          %v326 = vshrl.u32 %v325, 7
          %v327 = vsub.s32 0, %v326
          %v328 = vrot.slane %v323, %v327
          %330 = vst [vmem:[#allocation2] sm:$0xff] %v328
        $region56: #{tpu_custom_call.1} parent=39 // pred_fallthru
          _
        %v331 = vld [vmem:[%s272] sm:$0xff]
        %v332 = vpack.c.bf16 %v331, %v331
        %v333 = vld [vmem:[#allocation6] sm:$0xff]
        %v334 = vld [vmem:[#allocation6 + $0x8] sm:$0xff]
        %v335 = vld [vmem:[#allocation6 + $0x10] sm:$0xff]
        %v336 = vld [vmem:[#allocation6 + $0x18] sm:$0xff]
        %v337 = vld [vmem:[#allocation6 + $0x20] sm:$0xff]
        %v338 = vld [vmem:[#allocation6 + $0x28] sm:$0xff]
        %v339 = vld [vmem:[#allocation6 + $0x30] sm:$0xff]
        %v340 = vld [vmem:[#allocation6 + $0x38] sm:$0xff]
        %v341 = vld [vmem:[#allocation6 + $0x40] sm:$0xff]
        %v342 = vld [vmem:[#allocation6 + $0x48] sm:$0xff]
        %v343 = vld [vmem:[#allocation6 + $0x50] sm:$0xff]
        %v344 = vld [vmem:[#allocation6 + $0x58] sm:$0xff]
        %v345 = vld [vmem:[#allocation6 + $0x60] sm:$0xff]
        %v346 = vld [vmem:[#allocation6 + $0x68] sm:$0xff]
        %v347 = vld [vmem:[#allocation6 + $0x70] sm:$0xff]
        %v348 = vld [vmem:[#allocation6 + $0x78] sm:$0xff]
        %v349 = vld [vmem:[#allocation6 + $0x80] sm:$0xff]
        %v350 = vld [vmem:[#allocation6 + $0x88] sm:$0xff]
        %v351 = vld [vmem:[#allocation6 + $0x90] sm:$0xff]
        %v352 = vld [vmem:[#allocation6 + $0x98] sm:$0xff]
        %v353 = vld [vmem:[#allocation6 + $0xa0] sm:$0xff]
        %v354 = vld [vmem:[#allocation6 + $0xa8] sm:$0xff]
        %v355 = vld [vmem:[#allocation6 + $0xb0] sm:$0xff]
        %v356 = vld [vmem:[#allocation6 + $0xb8] sm:$0xff]
        %v357 = vld [vmem:[#allocation6 + $0xc0] sm:$0xff]
        %v358 = vld [vmem:[#allocation6 + $0xc8] sm:$0xff]
        %v359 = vld [vmem:[#allocation6 + $0xd0] sm:$0xff]
        %v360 = vld [vmem:[#allocation6 + $0xd8] sm:$0xff]
        %v361 = vld [vmem:[#allocation6 + $0xe0] sm:$0xff]
        %v362 = vld [vmem:[#allocation6 + $0xe8] sm:$0xff]
        %v363 = vld [vmem:[#allocation6 + $0xf0] sm:$0xff]
        %v364 = vld [vmem:[#allocation6 + $0xf8] sm:$0xff]
        %v365 = vld [vmem:[#allocation6 + $0x100] sm:$0xff]
        %v366 = vld [vmem:[#allocation6 + $0x108] sm:$0xff]
        %v367 = vld [vmem:[#allocation6 + $0x110] sm:$0xff]
        %v368 = vld [vmem:[#allocation6 + $0x118] sm:$0xff]
        %v369 = vld [vmem:[#allocation6 + $0x120] sm:$0xff]
        %v370 = vld [vmem:[#allocation6 + $0x128] sm:$0xff]
        %v371 = vld [vmem:[#allocation6 + $0x130] sm:$0xff]
        %v372 = vld [vmem:[#allocation6 + $0x138] sm:$0xff]
        %v373 = vld [vmem:[#allocation6 + $0x140] sm:$0xff]
        %v374 = vld [vmem:[#allocation6 + $0x148] sm:$0xff]
        %v375 = vld [vmem:[#allocation6 + $0x150] sm:$0xff]
        %v376 = vld [vmem:[#allocation6 + $0x158] sm:$0xff]
        %v377 = vld [vmem:[#allocation6 + $0x160] sm:$0xff]
        %v378 = vld [vmem:[#allocation6 + $0x168] sm:$0xff]
        %v379 = vld [vmem:[#allocation6 + $0x170] sm:$0xff]
        %v380 = vld [vmem:[#allocation6 + $0x178] sm:$0xff]
        %v381 = vld [vmem:[#allocation6 + $0x180] sm:$0xff]
        %v382 = vld [vmem:[#allocation6 + $0x188] sm:$0xff]
        %v383 = vld [vmem:[#allocation6 + $0x190] sm:$0xff]
        %v384 = vld [vmem:[#allocation6 + $0x198] sm:$0xff]
        %v385 = vld [vmem:[#allocation6 + $0x1a0] sm:$0xff]
        %v386 = vld [vmem:[#allocation6 + $0x1a8] sm:$0xff]
        %v387 = vld [vmem:[#allocation6 + $0x1b0] sm:$0xff]
        %v388 = vld [vmem:[#allocation6 + $0x1b8] sm:$0xff]
        %v389 = vld [vmem:[#allocation6 + $0x1c0] sm:$0xff]
        %v390 = vld [vmem:[#allocation6 + $0x1c8] sm:$0xff]
        %v391 = vld [vmem:[#allocation6 + $0x1d0] sm:$0xff]
        %v392 = vld [vmem:[#allocation6 + $0x1d8] sm:$0xff]
        %v393 = vld [vmem:[#allocation6 + $0x1e0] sm:$0xff]
        %v394 = vld [vmem:[#allocation6 + $0x1e8] sm:$0xff]
        %v395 = vld [vmem:[#allocation6 + $0x1f0] sm:$0xff]
        %v396 = vld [vmem:[#allocation6 + $0x1f8] sm:$0xff]
        %v397 = vpack.c.bf16 %v337, %v333
        %v398 = vpack.c.bf16 %v338, %v334
        %v399 = vpack.c.bf16 %v339, %v335
        %v400 = vpack.c.bf16 %v340, %v336
        %v401 = vpack.c.bf16 %v345, %v341
        %v402 = vpack.c.bf16 %v346, %v342
        %v403 = vpack.c.bf16 %v347, %v343
        %v404 = vpack.c.bf16 %v348, %v344
        %v405 = vpack.c.bf16 %v353, %v349
        %v406 = vpack.c.bf16 %v354, %v350
        %v407 = vpack.c.bf16 %v355, %v351
        %v408 = vpack.c.bf16 %v356, %v352
        %v409 = vpack.c.bf16 %v361, %v357
        %v410 = vpack.c.bf16 %v362, %v358
        %v411 = vpack.c.bf16 %v363, %v359
        %v412 = vpack.c.bf16 %v364, %v360
        %v413 = vpack.c.bf16 %v369, %v365
        %v414 = vpack.c.bf16 %v370, %v366
        %v415 = vpack.c.bf16 %v371, %v367
        %v416 = vpack.c.bf16 %v372, %v368
        %v417 = vpack.c.bf16 %v377, %v373
        %v418 = vpack.c.bf16 %v378, %v374
        %v419 = vpack.c.bf16 %v379, %v375
        %v420 = vpack.c.bf16 %v380, %v376
        %v421 = vpack.c.bf16 %v385, %v381
        %v422 = vpack.c.bf16 %v386, %v382
        %v423 = vpack.c.bf16 %v387, %v383
        %v424 = vpack.c.bf16 %v388, %v384
        %v425 = vpack.c.bf16 %v393, %v389
        %v426 = vpack.c.bf16 %v394, %v390
        %v427 = vpack.c.bf16 %v395, %v391
        %v428 = vpack.c.bf16 %v396, %v392
        %v429 = vld [vmem:[%s315] sm:$0xf]
        %v431 = vlaneseq
        %v432 = vshrl.u32 %v431, 7
        %v433 = vsub.s32 0, %v432
        %v434 = vrot.slane %v429, %v433
        %v435 = vlaneseq
        %v436 = vshrl.u32 %v435, 7
        %v437 = vsub.s32 1, %v436
        %v438 = vrot.slane %v429, %v437
        %v439 = vlaneseq
        %v440 = vshrl.u32 %v439, 7
        %v441 = vsub.s32 2, %v440
        %v442 = vrot.slane %v429, %v441
        %v443 = vlaneseq
        %v444 = vshrl.u32 %v443, 7
        %v445 = vsub.s32 3, %v444
        %v446 = vrot.slane %v429, %v445
        %451 = vmatprep.subr.bf16.mxu0 %v398
        %452 = vmatpush1.bf16.msra.mxu0 %v397
        %453 = vmatprep.subr.bf16.mxu0 %v402
        %454 = vmatpush1.bf16.msra.mxu0 %v401
        %455 = vmatprep.subr.bf16.mxu0 %v406
        %456 = vmatpush1.bf16.msra.mxu0 %v405
        %457 = vmatprep.subr.bf16.mxu0 %v410
        %458 = vmatpush1.bf16.msra.mxu0 %v409
        %459 = vmatprep.subr.bf16.mxu0 %v414
        %460 = vmatpush1.bf16.msra.mxu0 %v413
        %461 = vmatprep.subr.bf16.mxu0 %v418
        %462 = vmatpush1.bf16.msra.mxu0 %v417
        %463 = vmatprep.subr.bf16.mxu0 %v422
        %464 = vmatpush1.bf16.msra.mxu0 %v421
        %465 = vmatprep.subr.bf16.mxu0 %v426
        %466 = vmatpush1.bf16.msra.mxu0 %v425
        %467 = vmatprep.subr.bf16.mxu0 0
        %468 = vmatpush1.bf16.msra.mxu0 0
        %469 = vmatprep.subr.bf16.mxu0 0
        %470 = vmatpush1.bf16.msra.mxu0 0
        %471 = vmatprep.subr.bf16.mxu0 0
        %472 = vmatpush1.bf16.msra.mxu0 0
        %473 = vmatprep.subr.bf16.mxu0 0
        %474 = vmatpush1.bf16.msra.mxu0 0
        %475 = vmatprep.subr.bf16.mxu0 0
        %476 = vmatpush1.bf16.msra.mxu0 0
        %477 = vmatprep.subr.bf16.mxu0 0
        %478 = vmatpush1.bf16.msra.mxu0 0
        %479 = vmatprep.subr.bf16.mxu0 0
        %480 = vmatpush1.bf16.msra.mxu0 0
        %481 = vmatprep.subr.bf16.mxu0 0
        %482 = vmatpush1.bf16.msra.mxu0 0
        %483 = vmatprep.mubr.bf16.mxu0 0
        %484 = vmatmul.mubr.bf16.gmra.mrb[0].mxu0 %v332
        %v485 = vpop.f32.mrb[0].mxu0
        %v486 = vadd.f32 %v434, %v485
        %v487 = vpop.f32.mrb[0].mxu0
        %v488 = vadd.f32 %v438, %v487
        %v489 = vpop.f32.mrb[0].mxu0
        %v490 = vpop.f32.mrb[0].mxu0
        %491 = vdwg.mxu0
        %492 = vmatprep.subr.bf16.mxu0 %v400
        %493 = vmatpush1.bf16.msra.mxu0 %v399
        %494 = vmatprep.subr.bf16.mxu0 %v404
        %495 = vmatpush1.bf16.msra.mxu0 %v403
        %496 = vmatprep.subr.bf16.mxu0 %v408
        %497 = vmatpush1.bf16.msra.mxu0 %v407
        %498 = vmatprep.subr.bf16.mxu0 %v412
        %499 = vmatpush1.bf16.msra.mxu0 %v411
        %500 = vmatprep.subr.bf16.mxu0 %v416
        %501 = vmatpush1.bf16.msra.mxu0 %v415
        %502 = vmatprep.subr.bf16.mxu0 %v420
        %503 = vmatpush1.bf16.msra.mxu0 %v419
        %504 = vmatprep.subr.bf16.mxu0 %v424
        %505 = vmatpush1.bf16.msra.mxu0 %v423
        %506 = vmatprep.subr.bf16.mxu0 %v428
        %507 = vmatpush1.bf16.msra.mxu0 %v427
        %508 = vmatprep.subr.bf16.mxu0 0
        %509 = vmatpush1.bf16.msra.mxu0 0
        %510 = vmatprep.subr.bf16.mxu0 0
        %511 = vmatpush1.bf16.msra.mxu0 0
        %512 = vmatprep.subr.bf16.mxu0 0
        %513 = vmatpush1.bf16.msra.mxu0 0
        %514 = vmatprep.subr.bf16.mxu0 0
        %515 = vmatpush1.bf16.msra.mxu0 0
        %516 = vmatprep.subr.bf16.mxu0 0
        %517 = vmatpush1.bf16.msra.mxu0 0
        %518 = vmatprep.subr.bf16.mxu0 0
        %519 = vmatpush1.bf16.msra.mxu0 0
        %520 = vmatprep.subr.bf16.mxu0 0
        %521 = vmatpush1.bf16.msra.mxu0 0
        %522 = vmatprep.subr.bf16.mxu0 0
        %523 = vmatpush1.bf16.msra.mxu0 0
        %524 = vmatprep.mubr.bf16.mxu0 0
        %525 = vmatmul.mubr.bf16.gmra.mrb[0].mxu0 %v332
        %v526 = vpop.f32.mrb[0].mxu0
        %v527 = vadd.f32 %v442, %v526
        %v528 = vpop.f32.mrb[0].mxu0
        %v529 = vadd.f32 %v446, %v528
        %v530 = vpop.f32.mrb[0].mxu0
        %v531 = vpop.f32.mrb[0].mxu0
        %532 = vdwg.mxu0
        %v533 = vmul.f32 %v486, 0.5
        %v534 = vmul.f32 %v488, 0.5
        %v535 = vmul.f32 %v527, 0.5
        %v536 = vmul.f32 %v529, 0.5
        %v537 = vmul.f32 %v486, %v486
        %v538 = vmul.f32 %v488, %v488
        %v539 = vmul.f32 %v527, %v527
        %v540 = vmul.f32 %v529, %v529
        %v541 = vmul.f32 %v537, %v486
        %v542 = vmul.f32 %v538, %v488
        %v543 = vmul.f32 %v539, %v527
        %v544 = vmul.f32 %v540, %v529
        %v545 = vmul.f32 %v541, 0.044715
        %v546 = vmul.f32 %v542, 0.044715
        %v547 = vmul.f32 %v543, 0.044715
        %v548 = vmul.f32 %v544, 0.044715
        %v549 = vadd.f32 %v486, %v545
        %v550 = vadd.f32 %v488, %v546
        %v551 = vadd.f32 %v527, %v547
        %v552 = vadd.f32 %v529, %v548
        %v553 = vmul.f32 %v549, 0.7978846
        %v554 = vmul.f32 %v550, 0.7978846
        %v555 = vmul.f32 %v551, 0.7978846
        %v556 = vmul.f32 %v552, 0.7978846
        %v557 = vtanh.pop %v553
        %v558 = vtanh.pop %v554
        %v559 = vtanh.pop %v555
        %v560 = vtanh.pop %v556
        %v561 = vadd.f32 %v557, 1.0
        %v562 = vadd.f32 %v558, 1.0
        %v563 = vadd.f32 %v559, 1.0
        %v564 = vadd.f32 %v560, 1.0
        %v565 = vmul.f32 %v533, %v561
        %v566 = vmul.f32 %v534, %v562
        %v567 = vmul.f32 %v535, %v563
        %v568 = vmul.f32 %v536, %v564
        %v569 = vld [vmem:[#allocation2] sm:$0xff]
        %v570 = vpack.c.bf16 %v565, %v565
        %v571 = vpack.c.bf16 %v566, %v566
        %v572 = vpack.c.bf16 %v567, %v567
        %v573 = vpack.c.bf16 %v568, %v568
        %v574 = vld [vmem:[#allocation8] sm:$0xff]
        %v575 = vld [vmem:[#allocation8 + $0x8] sm:$0xff]
        %v576 = vld [vmem:[#allocation8 + $0x10] sm:$0xff]
        %v577 = vld [vmem:[#allocation8 + $0x18] sm:$0xff]
        %v578 = vld [vmem:[#allocation8 + $0x20] sm:$0xff]
        %v579 = vld [vmem:[#allocation8 + $0x28] sm:$0xff]
        %v580 = vld [vmem:[#allocation8 + $0x30] sm:$0xff]
        %v581 = vld [vmem:[#allocation8 + $0x38] sm:$0xff]
        %v582 = vld [vmem:[#allocation8 + $0x40] sm:$0xff]
        %v583 = vld [vmem:[#allocation8 + $0x48] sm:$0xff]
        %v584 = vld [vmem:[#allocation8 + $0x50] sm:$0xff]
        %v585 = vld [vmem:[#allocation8 + $0x58] sm:$0xff]
        %v586 = vld [vmem:[#allocation8 + $0x60] sm:$0xff]
        %v587 = vld [vmem:[#allocation8 + $0x68] sm:$0xff]
        %v588 = vld [vmem:[#allocation8 + $0x70] sm:$0xff]
        %v589 = vld [vmem:[#allocation8 + $0x78] sm:$0xff]
        %v590 = vld [vmem:[#allocation8 + $0x80] sm:$0xff]
        %v591 = vld [vmem:[#allocation8 + $0x88] sm:$0xff]
        %v592 = vld [vmem:[#allocation8 + $0x90] sm:$0xff]
        %v593 = vld [vmem:[#allocation8 + $0x98] sm:$0xff]
        %v594 = vld [vmem:[#allocation8 + $0xa0] sm:$0xff]
        %v595 = vld [vmem:[#allocation8 + $0xa8] sm:$0xff]
        %v596 = vld [vmem:[#allocation8 + $0xb0] sm:$0xff]
        %v597 = vld [vmem:[#allocation8 + $0xb8] sm:$0xff]
        %v598 = vld [vmem:[#allocation8 + $0xc0] sm:$0xff]
        %v599 = vld [vmem:[#allocation8 + $0xc8] sm:$0xff]
        %v600 = vld [vmem:[#allocation8 + $0xd0] sm:$0xff]
        %v601 = vld [vmem:[#allocation8 + $0xd8] sm:$0xff]
        %v602 = vld [vmem:[#allocation8 + $0xe0] sm:$0xff]
        %v603 = vld [vmem:[#allocation8 + $0xe8] sm:$0xff]
        %v604 = vld [vmem:[#allocation8 + $0xf0] sm:$0xff]
        %v605 = vld [vmem:[#allocation8 + $0xf8] sm:$0xff]
        %v606 = vld [vmem:[#allocation8 + $0x100] sm:$0xff]
        %v607 = vld [vmem:[#allocation8 + $0x108] sm:$0xff]
        %v608 = vld [vmem:[#allocation8 + $0x110] sm:$0xff]
        %v609 = vld [vmem:[#allocation8 + $0x118] sm:$0xff]
        %v610 = vld [vmem:[#allocation8 + $0x120] sm:$0xff]
        %v611 = vld [vmem:[#allocation8 + $0x128] sm:$0xff]
        %v612 = vld [vmem:[#allocation8 + $0x130] sm:$0xff]
        %v613 = vld [vmem:[#allocation8 + $0x138] sm:$0xff]
        %v614 = vld [vmem:[#allocation8 + $0x140] sm:$0xff]
        %v615 = vld [vmem:[#allocation8 + $0x148] sm:$0xff]
        %v616 = vld [vmem:[#allocation8 + $0x150] sm:$0xff]
        %v617 = vld [vmem:[#allocation8 + $0x158] sm:$0xff]
        %v618 = vld [vmem:[#allocation8 + $0x160] sm:$0xff]
        %v619 = vld [vmem:[#allocation8 + $0x168] sm:$0xff]
        %v620 = vld [vmem:[#allocation8 + $0x170] sm:$0xff]
        %v621 = vld [vmem:[#allocation8 + $0x178] sm:$0xff]
        %v622 = vld [vmem:[#allocation8 + $0x180] sm:$0xff]
        %v623 = vld [vmem:[#allocation8 + $0x188] sm:$0xff]
        %v624 = vld [vmem:[#allocation8 + $0x190] sm:$0xff]
        %v625 = vld [vmem:[#allocation8 + $0x198] sm:$0xff]
        %v626 = vld [vmem:[#allocation8 + $0x1a0] sm:$0xff]
        %v627 = vld [vmem:[#allocation8 + $0x1a8] sm:$0xff]
        %v628 = vld [vmem:[#allocation8 + $0x1b0] sm:$0xff]
        %v629 = vld [vmem:[#allocation8 + $0x1b8] sm:$0xff]
        %v630 = vld [vmem:[#allocation8 + $0x1c0] sm:$0xff]
        %v631 = vld [vmem:[#allocation8 + $0x1c8] sm:$0xff]
        %v632 = vld [vmem:[#allocation8 + $0x1d0] sm:$0xff]
        %v633 = vld [vmem:[#allocation8 + $0x1d8] sm:$0xff]
        %v634 = vld [vmem:[#allocation8 + $0x1e0] sm:$0xff]
        %v635 = vld [vmem:[#allocation8 + $0x1e8] sm:$0xff]
        %v636 = vld [vmem:[#allocation8 + $0x1f0] sm:$0xff]
        %v637 = vld [vmem:[#allocation8 + $0x1f8] sm:$0xff]
        %v638 = vpack.c.bf16 %v575, %v574
        %v639 = vpack.c.bf16 %v577, %v576
        %v640 = vpack.c.bf16 %v579, %v578
        %v641 = vpack.c.bf16 %v581, %v580
        %v642 = vpack.c.bf16 %v583, %v582
        %v643 = vpack.c.bf16 %v585, %v584
        %v644 = vpack.c.bf16 %v587, %v586
        %v645 = vpack.c.bf16 %v589, %v588
        %v646 = vpack.c.bf16 %v591, %v590
        %v647 = vpack.c.bf16 %v593, %v592
        %v648 = vpack.c.bf16 %v595, %v594
        %v649 = vpack.c.bf16 %v597, %v596
        %v650 = vpack.c.bf16 %v599, %v598
        %v651 = vpack.c.bf16 %v601, %v600
        %v652 = vpack.c.bf16 %v603, %v602
        %v653 = vpack.c.bf16 %v605, %v604
        %v654 = vpack.c.bf16 %v607, %v606
        %v655 = vpack.c.bf16 %v609, %v608
        %v656 = vpack.c.bf16 %v611, %v610
        %v657 = vpack.c.bf16 %v613, %v612
        %v658 = vpack.c.bf16 %v615, %v614
        %v659 = vpack.c.bf16 %v617, %v616
        %v660 = vpack.c.bf16 %v619, %v618
        %v661 = vpack.c.bf16 %v621, %v620
        %v662 = vpack.c.bf16 %v623, %v622
        %v663 = vpack.c.bf16 %v625, %v624
        %v664 = vpack.c.bf16 %v627, %v626
        %v665 = vpack.c.bf16 %v629, %v628
        %v666 = vpack.c.bf16 %v631, %v630
        %v667 = vpack.c.bf16 %v633, %v632
        %v668 = vpack.c.bf16 %v635, %v634
        %v669 = vpack.c.bf16 %v637, %v636
        %670 = vmatprep.subr.bf16.mxu0 0
        %671 = vmatpush1.bf16.msra.mxu0 %v638
        %672 = vmatprep.subr.bf16.mxu0 0
        %673 = vmatpush1.bf16.msra.mxu0 %v639
        %674 = vmatprep.subr.bf16.mxu0 0
        %675 = vmatpush1.bf16.msra.mxu0 %v640
        %676 = vmatprep.subr.bf16.mxu0 0
        %677 = vmatpush1.bf16.msra.mxu0 %v641
        %678 = vmatprep.subr.bf16.mxu0 0
        %679 = vmatpush1.bf16.msra.mxu0 %v642
        %680 = vmatprep.subr.bf16.mxu0 0
        %681 = vmatpush1.bf16.msra.mxu0 %v643
        %682 = vmatprep.subr.bf16.mxu0 0
        %683 = vmatpush1.bf16.msra.mxu0 %v644
        %684 = vmatprep.subr.bf16.mxu0 0
        %685 = vmatpush1.bf16.msra.mxu0 %v645
        %686 = vmatprep.subr.bf16.mxu0 0
        %687 = vmatpush1.bf16.msra.mxu0 %v646
        %688 = vmatprep.subr.bf16.mxu0 0
        %689 = vmatpush1.bf16.msra.mxu0 %v647
        %690 = vmatprep.subr.bf16.mxu0 0
        %691 = vmatpush1.bf16.msra.mxu0 %v648
        %692 = vmatprep.subr.bf16.mxu0 0
        %693 = vmatpush1.bf16.msra.mxu0 %v649
        %694 = vmatprep.subr.bf16.mxu0 0
        %695 = vmatpush1.bf16.msra.mxu0 %v650
        %696 = vmatprep.subr.bf16.mxu0 0
        %697 = vmatpush1.bf16.msra.mxu0 %v651
        %698 = vmatprep.subr.bf16.mxu0 0
        %699 = vmatpush1.bf16.msra.mxu0 %v652
        %700 = vmatprep.subr.bf16.mxu0 0
        %701 = vmatpush1.bf16.msra.mxu0 %v653
        %702 = vmatprep.mubr.bf16.mxu0 %v571
        %703 = vmatmul.mubr.bf16.gmra.mrb[0].mxu0 %v570
        %v704 = vpop.f32.mrb[0].mxu0
        %v705 = vadd.f32 0.0, %v704
        %v706 = vpop.f32.mrb[0].mxu0
        %v707 = vpop.f32.mrb[0].mxu0
        %v708 = vpop.f32.mrb[0].mxu0
        %709 = vdwg.mxu0
        %710 = vmatprep.subr.bf16.mxu0 0
        %711 = vmatpush1.bf16.msra.mxu0 %v654
        %712 = vmatprep.subr.bf16.mxu0 0
        %713 = vmatpush1.bf16.msra.mxu0 %v655
        %714 = vmatprep.subr.bf16.mxu0 0
        %715 = vmatpush1.bf16.msra.mxu0 %v656
        %716 = vmatprep.subr.bf16.mxu0 0
        %717 = vmatpush1.bf16.msra.mxu0 %v657
        %718 = vmatprep.subr.bf16.mxu0 0
        %719 = vmatpush1.bf16.msra.mxu0 %v658
        %720 = vmatprep.subr.bf16.mxu0 0
        %721 = vmatpush1.bf16.msra.mxu0 %v659
        %722 = vmatprep.subr.bf16.mxu0 0
        %723 = vmatpush1.bf16.msra.mxu0 %v660
        %724 = vmatprep.subr.bf16.mxu0 0
        %725 = vmatpush1.bf16.msra.mxu0 %v661
        %726 = vmatprep.subr.bf16.mxu0 0
        %727 = vmatpush1.bf16.msra.mxu0 %v662
        %728 = vmatprep.subr.bf16.mxu0 0
        %729 = vmatpush1.bf16.msra.mxu0 %v663
        %730 = vmatprep.subr.bf16.mxu0 0
        %731 = vmatpush1.bf16.msra.mxu0 %v664
        %732 = vmatprep.subr.bf16.mxu0 0
        %733 = vmatpush1.bf16.msra.mxu0 %v665
        %734 = vmatprep.subr.bf16.mxu0 0
        %735 = vmatpush1.bf16.msra.mxu0 %v666
        %736 = vmatprep.subr.bf16.mxu0 0
        %737 = vmatpush1.bf16.msra.mxu0 %v667
        %738 = vmatprep.subr.bf16.mxu0 0
        %739 = vmatpush1.bf16.msra.mxu0 %v668
        %740 = vmatprep.subr.bf16.mxu0 0
        %741 = vmatpush1.bf16.msra.mxu0 %v669
        %742 = vmatprep.mubr.bf16.mxu0 %v573
        %743 = vmatmul.mubr.bf16.gmra.mrb[0].mxu0 %v572
        %v744 = vpop.f32.mrb[0].mxu0
        %v745 = vadd.f32 %v705, %v744
        %v746 = vpop.f32.mrb[0].mxu0
        %v747 = vpop.f32.mrb[0].mxu0
        %v748 = vpop.f32.mrb[0].mxu0
        %749 = vdwg.mxu0
        %v750 = vadd.f32 %v569, %v745
        %751 = vst [vmem:[#allocation2] sm:$0xff] %v750
        // Predicated region
        $region57: #{tpu_custom_call.1} parent=39 // pred_check
          %p752 = pneg %p319
        $region58: #{tpu_custom_call.1} parent=39 // pred_check_branch
          %754 = sbr.rel (%p752) target = $region60
        $region59: #{tpu_custom_call.1} parent=39 // pred_region
          %v755 = vld [vmem:[#allocation2] sm:$0xff]
          %756 = vst [vmem:[%s310] sm:$0xff] %v755
        $region60: #{tpu_custom_call.1} parent=39 // pred_fallthru
          _
        %s757 = sand.u32 %s168, 1
        %s758 = scalar_lea.sflag [#allocation5], %s757
        %s759 = sand.u32 %s168, 1
        %s760 = smul.addr %s759, 8
        %s761 = scalar_lea.vmem [#allocation9], %s760
        // Predicated region
        $region61: #{tpu_custom_call.1} parent=39 // pred_check
          %p762 = pneg %p178
        $region62: #{tpu_custom_call.1} parent=39 // pred_check_branch
          %764 = sbr.rel (%p762) target = $region64
        $region63: #{tpu_custom_call.1} parent=39 // pred_region
          %s766 = ssub.s32 128, 128
          %767 = vsyncadd %s758, %s766
          %s768 = smul.addr %s27, 128
          %s769 = scalar_lea.hbm %s5, %s768
          %s771 = sshll.u32 %s761, 4
          %s772 = int_to_ptr.vmem [resolvable:$true] %s771
          %774 = dma.vmem_to_hbm [thread:$0]  %s772, 128, %s769, %s758
        $region64: #{tpu_custom_call.1} parent=39 // pred_fallthru
          _
      $region40: #{tpu_custom_call.1} parent=5 // pred_fallthru
        _
      %p775 = scmp.le.s32.totalorder 2, %s18
      // Predicated region
      $region65: #{tpu_custom_call.1} parent=5 // pred_check
        %p776 = pneg %p775
      $region66: #{tpu_custom_call.1} parent=5 // pred_check_branch
        %778 = sbr.rel (%p776) target = $region68
      $region67: #{tpu_custom_call.1} parent=5 // pred_region
        %s779 = ssub.s32 %s18, 2
        // Predicated region
        $region69: #{tpu_custom_call.1} parent=67 // pred_check
          %p780 = pneg %p184
        $region70: #{tpu_custom_call.1} parent=67 // pred_check_branch
          %782 = sbr.rel (%p780) target = $region72
        $region71: #{tpu_custom_call.1} parent=67 // pred_region
          %s783 = sand.u32 %s169, 1
          %s784 = scalar_lea.sflag [#allocation5], %s783
          %s785 = sand.u32 %s169, 1
          %s786 = smul.addr %s785, 8
          %s787 = scalar_lea.vmem [#allocation9], %s786
          %788 = dma.done %s784, 128
        $region72: #{tpu_custom_call.1} parent=67 // pred_fallthru
          _
      $region68: #{tpu_custom_call.1} parent=5 // pred_fallthru
        _
    $region6: #{tpu_custom_call.1} parent=1 // loop_footer
      %s22 = sadd.s32 1, %s18
    $region7: #{tpu_custom_call.1} parent=1 // loop_footer_branch
      %17 = sbr.rel target = $region3
    $region8: #{tpu_custom_call.1} parent=1 // loop_exit
      _
    %789 = vsyncpa [#allocation4], 1
    %s790 = scalar_lea.sflag [#allocation4], 1
    %791 = vsyncpa %s790, 1
    %792 = vsyncpa [#allocation7], 1
    %793 = vsyncpa [#allocation5], 1
    %s794 = scalar_lea.sflag [#allocation5], 1
    %795 = vsyncpa %s794, 1

</llo_original>
